<compile_context>
chip_gen: v7x
topology: tpu7x:2x2x1
jax: 0.10.0
libtpu: 0.0.40
codegen_flags: <defaults>
</compile_context>

<pallas_src>
import functools

import jax
import jax.numpy as jnp
from jax.experimental import pallas as pl
from jax.experimental.pallas import tpu as pltpu

LN_EPS = 1e-5


def _round_up(x, m):
    return ((x + m - 1) // m) * m


# -----------------------------------------------------------------------------
# Kernel: one batch tile of the fused two-tower MLP + LayerNorm + partial MSE
# -----------------------------------------------------------------------------
def align_kernel(x_ref, w1_ref, w2_ref, vec_ref, out_ref, *,
                 tile_rows, valid_rows, out_dim):
    """
    x_ref  : (2*TB, IN2) bf16 — rows [0,TB) text tower, [TB,2*TB) ctr tower;
             per-tower features live in disjoint K columns + bias indicator cols.
    w1_ref : (IN2, 2*HID) bf16 — block-diag [lm_w1 | cm_w1], with lm_b1 / cm_b1
             folded in on the indicator rows.
    w2_ref : (2*HID, OUT) bf16 — row-stacked [lm_w2 ; cm_w2].
    vec_ref: (8, 128) f32 — rows: lm_b2, cm_b2, lm_g, cm_g, lm_be, cm_be.
    out_ref: (1, 8, 128) f32 — partial sum of squared differences for this tile
             (scalar broadcast over the block; lane-dense store).
    """
    TB = tile_rows
    d = out_dim

    x = x_ref[...]
    w1 = w1_ref[...]
    w2 = w2_ref[...]
    vec = vec_ref[...]

    # Layer 1 (Dropout = identity in eval): Linear (+bias via indicator cols) -> ReLU.
    h = jnp.dot(x, w1, preferred_element_type=jnp.float32)
    h = jnp.maximum(h, 0.0).astype(jnp.bfloat16)
    # Layer 2: Linear (bias added below) -> ReLU (last_activation=True).
    h = jnp.dot(h, w2, preferred_element_type=jnp.float32)          # (2*TB, d) f32

    # Per-tower bias / LayerNorm affine params, selected along sublanes.
    row = jax.lax.broadcasted_iota(jnp.int32, (2 * TB, 1), 0)
    is_text = row < TB
    b2 = jnp.where(is_text, vec[0:1, :d], vec[1:2, :d])
    g = jnp.where(is_text, vec[2:3, :d], vec[3:4, :d])
    be = jnp.where(is_text, vec[4:5, :d], vec[5:6, :d])

    h = jnp.maximum(h + b2, 0.0)

    # LayerNorm in f32.
    mu = jnp.mean(h, axis=-1, keepdims=True)
    var = jnp.mean((h - mu) * (h - mu), axis=-1, keepdims=True)
    y = (h - mu) * jax.lax.rsqrt(var + LN_EPS) * g + be

    # Partial MSE: diff of the two sublane halves, padded batch rows masked out.
    diff = y[:TB] - y[TB:]
    r = jax.lax.broadcasted_iota(jnp.int32, (TB, 1), 0)
    valid = (pl.program_id(0) * TB + r) < valid_rows
    partial = jnp.sum(jnp.where(valid, diff * diff, 0.0))

    out_ref[...] = jnp.full(out_ref.shape, partial, dtype=jnp.float32)


# -----------------------------------------------------------------------------
# Constant-per-weights preprocessing (hoisted out of the per-batch path)
# -----------------------------------------------------------------------------
def fuse_align_params(params):
    """Pack PyTorch-layout weights into the fused kernel operands.

    Constant w.r.t. the batch: call once whenever params change. nn.Linear
    stores W as [out, in]; the kernel consumes [in, out].
    """
    hid, lm_in = params["lm_w1"].shape
    _, ctr_in = params["cm_w1"].shape
    out = params["lm_w2"].shape[0]
    assert out <= 128, "vec slab packing assumes projection output dim <= 128"

    in2 = max(128, _round_up(lm_in + ctr_in + 2, 128))
    i_lm = lm_in + ctr_in            # bias-indicator column for text rows
    i_cm = i_lm + 1                  # bias-indicator column for ctr rows

    # NOTE: for much larger projection_layers (per-tower HID/OUT >= 128) this
    # block-diag/stacked fusion starts wasting MXU throughput on structural
    # zeros; split back into per-tower matmuls in that regime.
    w1 = jnp.zeros((in2, 2 * hid), jnp.float32)
    w1 = w1.at[:lm_in, :hid].set(params["lm_w1"].T.astype(jnp.float32))
    w1 = w1.at[lm_in:lm_in + ctr_in, hid:].set(params["cm_w1"].T.astype(jnp.float32))
    w1 = w1.at[i_lm, :hid].set(params["lm_b1"].astype(jnp.float32))
    w1 = w1.at[i_cm, hid:].set(params["cm_b1"].astype(jnp.float32))

    w2 = jnp.concatenate([params["lm_w2"].T, params["cm_w2"].T],
                         axis=0).astype(jnp.float32)               # (2*HID, OUT)

    vec = jnp.zeros((8, 128), jnp.float32)
    vec = vec.at[0, :out].set(params["lm_b2"])
    vec = vec.at[1, :out].set(params["cm_b2"])
    vec = vec.at[2, :out].set(params["lm_g"])
    vec = vec.at[3, :out].set(params["cm_g"])
    vec = vec.at[4, :out].set(params["lm_be"])
    vec = vec.at[5, :out].set(params["cm_be"])

    return {"w1": w1.astype(jnp.bfloat16),
            "w2": w2.astype(jnp.bfloat16),
            "vec": vec}


# -----------------------------------------------------------------------------
# Forward wrapper (batched grid, resident weights, per-tile partial loss)
# -----------------------------------------------------------------------------
def align_forward(text_emb, ctr_emb, fused, *, tile_rows=256):
    B, lm_in = text_emb.shape
    ctr_in = ctr_emb.shape[1]
    w1, w2, vec = fused["w1"], fused["w2"], fused["vec"]
    in2 = w1.shape[0]
    hid2 = w1.shape[1]
    out = w2.shape[1]
    i_cm = lm_in + ctr_in + 1
    assert in2 >= i_cm + 1, "fused weights do not match input feature dims"

    # Batch tile: multiple of 16 sublanes (bf16 packing). Padded rows are masked
    # out of the loss inside the kernel.
    tb = min(tile_rows, _round_up(B, 16))
    b_pad = _round_up(B, tb)
    num_tiles = b_pad // tb

    # Text rows: [text | 0_ctr | 1 | 0...]    (lm bias indicator at col lm_in+ctr_in)
    # Ctr rows : [0_lm | ctr   | 0 | 1 | 0...] (cm bias indicator at col lm_in+ctr_in+1)
    bf = jnp.bfloat16
    tx = jnp.concatenate(
        [text_emb.astype(bf),
         jnp.zeros((B, ctr_in), bf),
         jnp.ones((B, 1), bf),
         jnp.zeros((B, in2 - i_cm), bf)], axis=1)
    cx = jnp.concatenate(
        [jnp.zeros((B, lm_in), bf),
         ctr_emb.astype(bf),
         jnp.zeros((B, 1), bf),
         jnp.ones((B, 1), bf),
         jnp.zeros((B, in2 - i_cm - 1), bf)], axis=1)
    pad = b_pad - B
    tx = jnp.pad(tx, ((0, pad), (0, 0)))
    cx = jnp.pad(cx, ((0, pad), (0, 0)))
    # Interleave at tile granularity: rows [i*2TB, i*2TB+TB) = text tile i,
    # rows [i*2TB+TB, (i+1)*2TB) = ctr tile i.
    x = jnp.concatenate([tx.reshape(num_tiles, tb, in2),
                         cx.reshape(num_tiles, tb, in2)],
                        axis=1).reshape(num_tiles * 2 * tb, in2)

    kernel = functools.partial(align_kernel, tile_rows=tb, valid_rows=B, out_dim=out)
    partials = pl.pallas_call(
        kernel,
        out_shape=jax.ShapeDtypeStruct((num_tiles, 8, 128), jnp.float32),
        grid=(num_tiles,),
        in_specs=[
            pl.BlockSpec((2 * tb, in2), lambda i: (i, 0)),   # streamed activations
            pl.BlockSpec((in2, hid2), lambda i: (0, 0)),     # resident weights
            pl.BlockSpec((hid2, out), lambda i: (0, 0)),     # resident weights
            pl.BlockSpec((8, 128), lambda i: (0, 0)),        # resident LN/bias slab
        ],
        out_specs=pl.BlockSpec((1, 8, 128), lambda i: (i, 0, 0)),
        compiler_params=pltpu.CompilerParams(
            dimension_semantics=("parallel",)),
    )(x, w1, w2, vec)

    # nn.MSELoss(reduction='mean'): mean over all B*OUT elements.
    loss = jnp.sum(partials[:, 0, 0]) / jnp.float32(B * out)
    return {"loss": loss}


# -----------------------------------------------------------------------------
# Independent reference (PyTorch semantics: W[out,in], x @ W.T + b, per tower).
# matmul_dtype=bf16 mirrors the kernel's MXU quantization for a tight check.
# -----------------------------------------------------------------------------
def align_reference(text_emb, ctr_emb, p, matmul_dtype=jnp.float32):
    def tower(x, w1, b1, w2, b2, gamma, beta):
        xm = x.astype(matmul_dtype)
        b1m = b1.astype(matmul_dtype).astype(jnp.float32)
        h = jnp.dot(xm, w1.T.astype(matmul_dtype),
                    preferred_element_type=jnp.float32) + b1m
        h = jnp.maximum(h, 0.0)
        h = jnp.dot(h.astype(matmul_dtype), w2.T.astype(matmul_dtype),
                    preferred_element_type=jnp.float32) + b2
        h = jnp.maximum(h, 0.0)
        mu = h.mean(-1, keepdims=True)
        var = ((h - mu) ** 2).mean(-1, keepdims=True)
        return (h - mu) / jnp.sqrt(var + LN_EPS) * gamma + beta

    tp = tower(text_emb, p["lm_w1"], p["lm_b1"], p["lm_w2"], p["lm_b2"],
               p["lm_g"], p["lm_be"])
    cp = tower(ctr_emb, p["cm_w1"], p["cm_b1"], p["cm_w2"], p["cm_b2"],
               p["cm_g"], p["cm_be"])
    return jnp.mean((tp - cp) ** 2)


# -----------------------------------------------------------------------------
# Parameter construction (PyTorch nn.Linear layout + init)
# -----------------------------------------------------------------------------
def make_params(key, lm_in, ctr_in, hid, out):
    ks = jax.random.split(key, 6)

    def lin(k, fan_in, fan_out):
        scale = 1.0 / jnp.sqrt(jnp.float32(fan_in))
        kw, kb = jax.random.split(k)
        w = jax.random.uniform(kw, (fan_out, fan_in), jnp.float32, -scale, scale)
        b = jax.random.uniform(kb, (fan_out,), jnp.float32, -scale, scale)
        return w, b

    lm_w1, lm_b1 = lin(ks[0], lm_in, hid)
    lm_w2, lm_b2 = lin(ks[1], hid, out)
    cm_w1, cm_b1 = lin(ks[2], ctr_in, hid)
    cm_w2, cm_b2 = lin(ks[3], hid, out)
    # LayerNorm params (randomized slightly so the slab packing is exercised).
    lm_g = 1.0 + 0.1 * jax.random.normal(ks[4], (out,), jnp.float32)
    cm_g = 1.0 + 0.1 * jax.random.normal(ks[5], (out,), jnp.float32)
    lm_be = 0.1 * jax.random.normal(ks[4], (out,), jnp.float32)
    cm_be = 0.1 * jax.random.normal(ks[5], (out,), jnp.float32)
    return {
        "lm_w1": lm_w1, "lm_b1": lm_b1, "lm_w2": lm_w2, "lm_b2": lm_b2,
        "lm_g": lm_g, "lm_be": lm_be,
        "cm_w1": cm_w1, "cm_b1": cm_b1, "cm_w2": cm_w2, "cm_b2": cm_b2,
        "cm_g": cm_g, "cm_be": cm_be,
    }


if __name__ == "__main__":
    # Synthetic config:
    #   batch B=8, lm hidden_size=32
    #   ctr embed_dim=8, len(item_fields)=4 -> ctr_emb dim = 8*(4-1)=24
    #   projection_layers = [64, 32] for both towers (last dims match, as asserted)
    B, H_LM, CTR_IN, HID, OUT = 8, 32, 24, 64, 32

    key = jax.random.PRNGKey(0)
    k_text, k_ctr, k_params = jax.random.split(key, 3)
    text_emb = jax.random.normal(k_text, (B, H_LM), jnp.float32)   # LM CLS embedding
    ctr_emb = jax.random.normal(k_ctr, (B, CTR_IN), jnp.float32)   # ctr embedding output
    params = make_params(k_params, H_LM, CTR_IN, HID, OUT)

    fused = fuse_align_params(params)          # hoisted: constant w.r.t. the batch
    fwd = jax.jit(align_forward)
    result = fwd(text_emb, ctr_emb, fused)
    loss = jax.block_until_ready(result["loss"])

    # Tight check vs a reference mirroring the kernel's bf16 matmul quantization,
    # loose check vs the pure-f32 PyTorch-semantics reference.
    ref_bf16 = align_reference(text_emb, ctr_emb, params, matmul_dtype=jnp.bfloat16)
    ref_f32 = align_reference(text_emb, ctr_emb, params, matmul_dtype=jnp.float32)
    assert jnp.allclose(loss, ref_bf16, rtol=2e-3, atol=1e-4), (loss, ref_bf16)
    assert jnp.allclose(loss, ref_f32, rtol=5e-2, atol=5e-3), (loss, ref_f32)
    print("KERNEL_OK")
</pallas_src>

<mosaic_0001>
module attributes {stable_mosaic.version = 11 : i64} {
  func.func @align_kernel(%arg0: i32, %arg1: memref<32x128xbf16, #tpu.memory_space<vmem>>, %arg2: memref<128x128xbf16, #tpu.memory_space<vmem>>, %arg3: memref<128x32xbf16, #tpu.memory_space<vmem>>, %arg4: memref<8x128xf32, #tpu.memory_space<vmem>>, %arg5: memref<1x8x128xf32, #tpu.memory_space<vmem>>) attributes {dimension_semantics = [#tpu.dimension_semantics<parallel>], iteration_bounds = array<i64: 1>, scalar_prefetch = 0 : i64, scratch_operands = 0 : i64, tpu.core_type = #tpu.core_type<tc>, window_params = [{transform_indices = @transform_0, window_bounds = array<i64: 32, 128>}, {pipeline_mode = #tpu.pipeline_mode<synchronous>, transform_indices = @transform_1, window_bounds = array<i64: 128, 128>}, {pipeline_mode = #tpu.pipeline_mode<synchronous>, transform_indices = @transform_2, window_bounds = array<i64: 128, 32>}, {pipeline_mode = #tpu.pipeline_mode<synchronous>, transform_indices = @transform_3, window_bounds = array<i64: 8, 128>}, {transform_indices = @transform_4, window_bounds = array<i64: 1, 8, 128>}]} {
    %c0 = arith.constant 0 : index
    %c0_0 = arith.constant 0 : index
    %0 = vector.load %arg1[%c0, %c0_0] : memref<32x128xbf16, #tpu.memory_space<vmem>>, vector<32x128xbf16>
    %c0_1 = arith.constant 0 : index
    %c0_2 = arith.constant 0 : index
    %1 = vector.load %arg2[%c0_1, %c0_2] : memref<128x128xbf16, #tpu.memory_space<vmem>>, vector<128x128xbf16>
    %c0_3 = arith.constant 0 : index
    %c0_4 = arith.constant 0 : index
    %2 = vector.load %arg3[%c0_3, %c0_4] : memref<128x32xbf16, #tpu.memory_space<vmem>>, vector<128x32xbf16>
    %c0_5 = arith.constant 0 : index
    %c0_6 = arith.constant 0 : index
    %3 = vector.load %arg4[%c0_5, %c0_6] : memref<8x128xf32, #tpu.memory_space<vmem>>, vector<8x128xf32>
    %cst = arith.constant dense<0.000000e+00> : vector<32x128xf32>
    %4 = tpu.matmul %0, %1, %cst {dimension_numbers = #tpu.dot_dimension_numbers<[1], [0], [0], [1], [0, 0, 1, 1], [], []>} : vector<32x128xbf16>, vector<128x128xbf16>, vector<32x128xf32> -> vector<32x128xf32>
    %cst_7 = arith.constant 0.000000e+00 : f32
    %5 = vector.broadcast %cst_7 : f32 to vector<32x128xf32>
    %6 = arith.maximumf %4, %5 : vector<32x128xf32>
    %7 = arith.truncf %6 : vector<32x128xf32> to vector<32x128xbf16>
    %cst_8 = arith.constant dense<0.000000e+00> : vector<32x32xf32>
    %8 = tpu.matmul %7, %2, %cst_8 {dimension_numbers = #tpu.dot_dimension_numbers<[1], [0], [0], [1], [0, 0, 1, 1], [], []>} : vector<32x128xbf16>, vector<128x32xbf16>, vector<32x32xf32> -> vector<32x32xf32>
    %9 = tpu.iota {dimensions = array<i32: 0>} : vector<32x1xi32>
    %c16_i32 = arith.constant 16 : i32
    %10 = vector.broadcast %c16_i32 : i32 to vector<32x1xi32>
    %11 = arith.cmpi slt, %9, %10 : vector<32x1xi32>
    %12 = vector.extract_strided_slice %3 {offsets = [0, 0], sizes = [1, 32], strides = [1, 1]} : vector<8x128xf32> to vector<1x32xf32>
    %13 = vector.extract_strided_slice %3 {offsets = [1, 0], sizes = [1, 32], strides = [1, 1]} : vector<8x128xf32> to vector<1x32xf32>
    %14 = vector.shape_cast %11 : vector<32x1xi1> to vector<32x1xi1>
    %15 = vector.broadcast %14 : vector<32x1xi1> to vector<32x32xi1>
    %16 = vector.shape_cast %12 : vector<1x32xf32> to vector<1x32xf32>
    %17 = vector.broadcast %16 : vector<1x32xf32> to vector<32x32xf32>
    %18 = vector.shape_cast %13 : vector<1x32xf32> to vector<1x32xf32>
    %19 = vector.broadcast %18 : vector<1x32xf32> to vector<32x32xf32>
    %20 = arith.select %15, %17, %19 : vector<32x32xi1>, vector<32x32xf32>
    %21 = vector.extract_strided_slice %3 {offsets = [2, 0], sizes = [1, 32], strides = [1, 1]} : vector<8x128xf32> to vector<1x32xf32>
    %22 = vector.extract_strided_slice %3 {offsets = [3, 0], sizes = [1, 32], strides = [1, 1]} : vector<8x128xf32> to vector<1x32xf32>
    %23 = vector.shape_cast %11 : vector<32x1xi1> to vector<32x1xi1>
    %24 = vector.broadcast %23 : vector<32x1xi1> to vector<32x32xi1>
    %25 = vector.shape_cast %21 : vector<1x32xf32> to vector<1x32xf32>
    %26 = vector.broadcast %25 : vector<1x32xf32> to vector<32x32xf32>
    %27 = vector.shape_cast %22 : vector<1x32xf32> to vector<1x32xf32>
    %28 = vector.broadcast %27 : vector<1x32xf32> to vector<32x32xf32>
    %29 = arith.select %24, %26, %28 : vector<32x32xi1>, vector<32x32xf32>
    %30 = vector.extract_strided_slice %3 {offsets = [4, 0], sizes = [1, 32], strides = [1, 1]} : vector<8x128xf32> to vector<1x32xf32>
    %31 = vector.extract_strided_slice %3 {offsets = [5, 0], sizes = [1, 32], strides = [1, 1]} : vector<8x128xf32> to vector<1x32xf32>
    %32 = vector.shape_cast %11 : vector<32x1xi1> to vector<32x1xi1>
    %33 = vector.broadcast %32 : vector<32x1xi1> to vector<32x32xi1>
    %34 = vector.shape_cast %30 : vector<1x32xf32> to vector<1x32xf32>
    %35 = vector.broadcast %34 : vector<1x32xf32> to vector<32x32xf32>
    %36 = vector.shape_cast %31 : vector<1x32xf32> to vector<1x32xf32>
    %37 = vector.broadcast %36 : vector<1x32xf32> to vector<32x32xf32>
    %38 = arith.select %33, %35, %37 : vector<32x32xi1>, vector<32x32xf32>
    %39 = arith.addf %8, %20 : vector<32x32xf32>
    %cst_9 = arith.constant 0.000000e+00 : f32
    %40 = vector.broadcast %cst_9 : f32 to vector<32x32xf32>
    %41 = arith.maximumf %39, %40 : vector<32x32xf32>
    %cst_10 = arith.constant dense<0.000000e+00> : vector<32xf32>
    %42 = vector.multi_reduction <add>, %41, %cst_10 [1] : vector<32x32xf32> to vector<32xf32>
    %43 = vector.shape_cast %42 : vector<32xf32> to vector<32x1xf32>
    %cst_11 = arith.constant 3.200000e+01 : f32
    %44 = vector.broadcast %cst_11 : f32 to vector<32x1xf32>
    %45 = arith.divf %43, %44 : vector<32x1xf32>
    %46 = vector.broadcast %45 : vector<32x1xf32> to vector<32x32xf32>
    %47 = arith.subf %41, %46 : vector<32x32xf32>
    %48 = vector.broadcast %45 : vector<32x1xf32> to vector<32x32xf32>
    %49 = arith.subf %41, %48 : vector<32x32xf32>
    %50 = arith.mulf %47, %49 : vector<32x32xf32>
    %cst_12 = arith.constant dense<0.000000e+00> : vector<32xf32>
    %51 = vector.multi_reduction <add>, %50, %cst_12 [1] : vector<32x32xf32> to vector<32xf32>
    %52 = vector.shape_cast %51 : vector<32xf32> to vector<32x1xf32>
    %cst_13 = arith.constant 3.200000e+01 : f32
    %53 = vector.broadcast %cst_13 : f32 to vector<32x1xf32>
    %54 = arith.divf %52, %53 : vector<32x1xf32>
    %55 = vector.broadcast %45 : vector<32x1xf32> to vector<32x32xf32>
    %56 = arith.subf %41, %55 : vector<32x32xf32>
    %cst_14 = arith.constant 9.99999974E-6 : f32
    %57 = vector.broadcast %cst_14 : f32 to vector<32x1xf32>
    %58 = arith.addf %54, %57 : vector<32x1xf32>
    %59 = math.rsqrt %58 : vector<32x1xf32>
    %60 = vector.broadcast %59 : vector<32x1xf32> to vector<32x32xf32>
    %61 = arith.mulf %56, %60 : vector<32x32xf32>
    %62 = arith.mulf %61, %29 : vector<32x32xf32>
    %63 = arith.addf %62, %38 : vector<32x32xf32>
    %64 = vector.extract_strided_slice %63 {offsets = [0, 0], sizes = [16, 32], strides = [1, 1]} : vector<32x32xf32> to vector<16x32xf32>
    %65 = vector.extract_strided_slice %63 {offsets = [16, 0], sizes = [16, 32], strides = [1, 1]} : vector<32x32xf32> to vector<16x32xf32>
    %66 = arith.subf %64, %65 : vector<16x32xf32>
    %67 = tpu.iota {dimensions = array<i32: 0>} : vector<16x1xi32>
    %c16_i32_15 = arith.constant 16 : i32
    %68 = arith.muli %arg0, %c16_i32_15 : i32
    %69 = vector.broadcast %68 : i32 to vector<16x1xi32>
    %70 = arith.addi %69, %67 : vector<16x1xi32>
    %c8_i32 = arith.constant 8 : i32
    %71 = vector.broadcast %c8_i32 : i32 to vector<16x1xi32>
    %72 = arith.cmpi slt, %70, %71 : vector<16x1xi32>
    %73 = arith.mulf %66, %66 : vector<16x32xf32>
    %cst_16 = arith.constant 0.000000e+00 : f32
    %74 = vector.shape_cast %72 : vector<16x1xi1> to vector<16x1xi1>
    %75 = vector.broadcast %74 : vector<16x1xi1> to vector<16x32xi1>
    %76 = vector.broadcast %cst_16 : f32 to vector<16x32xf32>
    %77 = arith.select %75, %73, %76 : vector<16x32xi1>, vector<16x32xf32>
    %78 = vector.shape_cast %77 : vector<16x32xf32> to vector<1x16x32xf32>
    %cst_17 = arith.constant dense<0.000000e+00> : vector<1xf32>
    %79 = vector.multi_reduction <add>, %78, %cst_17 [1, 2] : vector<1x16x32xf32> to vector<1xf32>
    %80 = vector.shape_cast %79 : vector<1xf32> to vector<1x1x1xf32>
    %81 = vector.extract %80[0, 0, 0] : f32 from vector<1x1x1xf32>
    %82 = vector.broadcast %81 : f32 to vector<1x8x128xf32>
    %c0_18 = arith.constant 0 : index
    %c0_19 = arith.constant 0 : index
    %c0_20 = arith.constant 0 : index
    %83 = vector.load %arg5[%c0_18, %c0_19, %c0_20] : memref<1x8x128xf32, #tpu.memory_space<vmem>>, vector<1x8x128xf32>
    tpu.vector_store %arg5[%c0_18, %c0_19, %c0_20], %82 {strides = array<i32>} : memref<1x8x128xf32, #tpu.memory_space<vmem>>, vector<1x8x128xf32>,
    return
  }
  func.func @transform_0(%arg0: i32) -> (i32, i32) {
    %c0_i32 = arith.constant 0 : i32
    %c0_i32_0 = arith.constant 0 : i32
    return %arg0, %c0_i32 : i32, i32
  }
  func.func @transform_1(%arg0: i32) -> (i32, i32) {
    %c0_i32 = arith.constant 0 : i32
    %c0_i32_0 = arith.constant 0 : i32
    %c0_i32_1 = arith.constant 0 : i32
    return %c0_i32, %c0_i32_0 : i32, i32
  }
  func.func @transform_2(%arg0: i32) -> (i32, i32) {
    %c0_i32 = arith.constant 0 : i32
    %c0_i32_0 = arith.constant 0 : i32
    %c0_i32_1 = arith.constant 0 : i32
    return %c0_i32, %c0_i32_0 : i32, i32
  }
  func.func @transform_3(%arg0: i32) -> (i32, i32) {
    %c0_i32 = arith.constant 0 : i32
    %c0_i32_0 = arith.constant 0 : i32
    %c0_i32_1 = arith.constant 0 : i32
    return %c0_i32, %c0_i32_0 : i32, i32
  }
  func.func @transform_4(%arg0: i32) -> (i32, i32, i32) {
    %c0_i32 = arith.constant 0 : i32
    %c0_i32_0 = arith.constant 0 : i32
    %c0_i32_1 = arith.constant 0 : i32
    return %arg0, %c0_i32, %c0_i32_0 : i32, i32, i32
  }
}

</mosaic_0001>

<llo_original>
// kernel: align_forward.1
$region0: #{align_forward.1}
  #allocation0 [shape = 'u32[]', space=smem, size = 0x4, offset = 0x4, fixed_abs, tag = 'smem constant byte address 0x4 - core index']
  #allocation1 [shape = 'u32[144,128]{1,0:T(1,128)}', space=vmem, size = 0x12000, scoped, tag = 'internal scratch']
  %s0 = inlined_call_operand.vmem [shape: bf16[32,128], index: 0, kind: input, shape index: {}]
  %s1 = inlined_call_operand.vmem [shape: bf16[128,128], index: 1, kind: input, shape index: {}]
  %s2 = inlined_call_operand.vmem [shape: bf16[128,32], index: 2, kind: input, shape index: {}]
  %s3 = inlined_call_operand.vmem [shape: f32[8,128], index: 3, kind: input, shape index: {}]
  %s4 = inlined_call_operand.vmem [shape: f32[1,8,128], index: 4, kind: output, shape index: {}]
  %s5 = sld [smem:[#allocation0]]
  $region26: #{align_forward.1} parent=0
    _
  %s7 = ssub.s32 1, %s5
  %s8 = scalar_select 0, %s7, %s5
  // Predicated region
  $region2: #{align_forward.1} parent=0 // pred_check
    _
  $region3: #{align_forward.1} parent=0 // pred_check_branch
    %10 = sbr.rel (0) target = $region5
  $region4: #{align_forward.1} parent=0 // pred_region
    _
  $region5: #{align_forward.1} parent=0 // pred_fallthru
    _
  // Predicated region
  $region6: #{align_forward.1} parent=0 // pred_check
    _
  $region7: #{align_forward.1} parent=0 // pred_check_branch
    %12 = sbr.rel (0) target = $region9
  $region8: #{align_forward.1} parent=0 // pred_region
    _
  $region9: #{align_forward.1} parent=0 // pred_fallthru
    _
  // Predicated region
  $region10: #{align_forward.1} parent=0 // pred_check
    _
  $region11: #{align_forward.1} parent=0 // pred_check_branch
    %14 = sbr.rel (0) target = $region13
  $region12: #{align_forward.1} parent=0 // pred_region
    _
  $region13: #{align_forward.1} parent=0 // pred_fallthru
    _
  // Predicated region
  $region14: #{align_forward.1} parent=0 // pred_check
    _
  $region15: #{align_forward.1} parent=0 // pred_check_branch
    %16 = sbr.rel (0) target = $region17
  $region16: #{align_forward.1} parent=0 // pred_region
    _
  $region17: #{align_forward.1} parent=0 // pred_fallthru
    _
  %v18 = vld [vmem:[%s0] sm:$0xf]
  %v19 = vld [vmem:[%s0 + $0x4] sm:$0xf]
  %v20 = vld [vmem:[%s0 + $0x8] sm:$0xf]
  %v21 = vld [vmem:[%s0 + $0xc] sm:$0xf]
  %v22 = vld [vmem:[%s1] sm:$0xf]
  %v23 = vld [vmem:[%s1 + $0x4] sm:$0xf]
  %v24 = vld [vmem:[%s1 + $0x8] sm:$0xf]
  %v25 = vld [vmem:[%s1 + $0xc] sm:$0xf]
  %v26 = vld [vmem:[%s1 + $0x10] sm:$0xf]
  %v27 = vld [vmem:[%s1 + $0x14] sm:$0xf]
  %v28 = vld [vmem:[%s1 + $0x18] sm:$0xf]
  %v29 = vld [vmem:[%s1 + $0x1c] sm:$0xf]
  %v30 = vld [vmem:[%s1 + $0x20] sm:$0xf]
  %v31 = vld [vmem:[%s1 + $0x24] sm:$0xf]
  %v32 = vld [vmem:[%s1 + $0x28] sm:$0xf]
  %v33 = vld [vmem:[%s1 + $0x2c] sm:$0xf]
  %v34 = vld [vmem:[%s1 + $0x30] sm:$0xf]
  %v35 = vld [vmem:[%s1 + $0x34] sm:$0xf]
  %v36 = vld [vmem:[%s1 + $0x38] sm:$0xf]
  %v37 = vld [vmem:[%s1 + $0x3c] sm:$0xf]
  %v38 = vld [vmem:[%s2] sm:$0xf]
  %v39 = vld [vmem:[%s2 + $0x4] sm:$0xf]
  %v40 = vld [vmem:[%s2 + $0x8] sm:$0xf]
  %v41 = vld [vmem:[%s2 + $0xc] sm:$0xf]
  %v42 = vld [vmem:[%s2 + $0x10] sm:$0xf]
  %v43 = vld [vmem:[%s2 + $0x14] sm:$0xf]
  %v44 = vld [vmem:[%s2 + $0x18] sm:$0xf]
  %v45 = vld [vmem:[%s2 + $0x1c] sm:$0xf]
  %v46 = vld [vmem:[%s2 + $0x20] sm:$0xf]
  %v47 = vld [vmem:[%s2 + $0x24] sm:$0xf]
  %v48 = vld [vmem:[%s2 + $0x28] sm:$0xf]
  %v49 = vld [vmem:[%s2 + $0x2c] sm:$0xf]
  %v50 = vld [vmem:[%s2 + $0x30] sm:$0xf]
  %v51 = vld [vmem:[%s2 + $0x34] sm:$0xf]
  %v52 = vld [vmem:[%s2 + $0x38] sm:$0xf]
  %v53 = vld [vmem:[%s2 + $0x3c] sm:$0xf]
  %v54 = vld [vmem:[%s3] sm:$0xff]
  %v59 = vunpack.c.l.b16 %v18
  %v60 = vunpack.c.l.b16 %v19
  %v61 = vunpack.c.l.b16 %v20
  %v62 = vunpack.c.l.b16 %v21
  %v63 = vpack.c.b16 %v60, %v59
  %v64 = vpack.c.b16 %v62, %v61
  %v83 = vunpack.c.l.b16 %v22
  %v84 = vunpack.c.l.b16 %v23
  %v85 = vunpack.c.l.b16 %v24
  %v86 = vunpack.c.l.b16 %v25
  %v87 = vunpack.c.l.b16 %v26
  %v88 = vunpack.c.l.b16 %v27
  %v89 = vunpack.c.l.b16 %v28
  %v90 = vunpack.c.l.b16 %v29
  %v91 = vunpack.c.l.b16 %v30
  %v92 = vunpack.c.l.b16 %v31
  %v93 = vunpack.c.l.b16 %v32
  %v94 = vunpack.c.l.b16 %v33
  %v95 = vunpack.c.l.b16 %v34
  %v96 = vunpack.c.l.b16 %v35
  %v97 = vunpack.c.l.b16 %v36
  %v98 = vunpack.c.l.b16 %v37
  %v99 = vpack.c.b16 %v84, %v83
  %v100 = vpack.c.b16 %v86, %v85
  %v101 = vpack.c.b16 %v88, %v87
  %v102 = vpack.c.b16 %v90, %v89
  %v103 = vpack.c.b16 %v92, %v91
  %v104 = vpack.c.b16 %v94, %v93
  %v105 = vpack.c.b16 %v96, %v95
  %v106 = vpack.c.b16 %v98, %v97
  %115 = vmatprep.subr.bf16.mxu0 0
  %116 = vmatpush1.bf16.msra.mxu0 %v99
  %117 = vmatprep.subr.bf16.mxu0 0
  %118 = vmatpush1.bf16.msra.mxu0 %v100
  %119 = vmatprep.subr.bf16.mxu0 0
  %120 = vmatpush1.bf16.msra.mxu0 %v101
  %121 = vmatprep.subr.bf16.mxu0 0
  %122 = vmatpush1.bf16.msra.mxu0 %v102
  %123 = vmatprep.subr.bf16.mxu0 0
  %124 = vmatpush1.bf16.msra.mxu0 %v103
  %125 = vmatprep.subr.bf16.mxu0 0
  %126 = vmatpush1.bf16.msra.mxu0 %v104
  %127 = vmatprep.subr.bf16.mxu0 0
  %128 = vmatpush1.bf16.msra.mxu0 %v105
  %129 = vmatprep.subr.bf16.mxu0 0
  %130 = vmatpush1.bf16.msra.mxu0 %v106
  %131 = vmatprep.subr.bf16.mxu0 0
  %132 = vmatpush1.bf16.msra.mxu0 0
  %133 = vmatprep.subr.bf16.mxu0 0
  %134 = vmatpush1.bf16.msra.mxu0 0
  %135 = vmatprep.subr.bf16.mxu0 0
  %136 = vmatpush1.bf16.msra.mxu0 0
  %137 = vmatprep.subr.bf16.mxu0 0
  %138 = vmatpush1.bf16.msra.mxu0 0
  %139 = vmatprep.subr.bf16.mxu0 0
  %140 = vmatpush1.bf16.msra.mxu0 0
  %141 = vmatprep.subr.bf16.mxu0 0
  %142 = vmatpush1.bf16.msra.mxu0 0
  %143 = vmatprep.subr.bf16.mxu0 0
  %144 = vmatpush1.bf16.msra.mxu0 0
  %145 = vmatprep.subr.bf16.mxu0 0
  %146 = vmatpush1.bf16.msra.mxu0 0
  %147 = vmatprep.mubr.bf16.mxu0 0
  %148 = vmatmul.mubr.bf16.gmra.mrb[0].mxu0 %v63
  %v149 = vpop.f32.mrb[0].mxu0
  %v150 = vadd.f32 0.0, %v149
  %v151 = vpop.f32.mrb[0].mxu0
  %v152 = vpop.f32.mrb[0].mxu0
  %v153 = vadd.f32 0.0, %v152
  %v154 = vpop.f32.mrb[0].mxu0
  %155 = vmatprep.mubr.bf16.mxu0 0
  %156 = vmatmul.mubr.bf16.gmra.mrb[0].mxu0 %v64
  %v157 = vpop.f32.mrb[0].mxu0
  %v158 = vadd.f32 0.0, %v157
  %v159 = vpop.f32.mrb[0].mxu0
  %v160 = vpop.f32.mrb[0].mxu0
  %v161 = vadd.f32 0.0, %v160
  %v162 = vpop.f32.mrb[0].mxu0
  %163 = vdwg.mxu0
  %v164 = vmax.f32 %v150, 0.0
  %v165 = vmax.f32 %v153, 0.0
  %v166 = vmax.f32 %v158, 0.0
  %v167 = vmax.f32 %v161, 0.0
  %v168 = vpack.c.bf16 %v165, %v164
  %v169 = vpack.c.bf16 %v167, %v166
  %v170 = vlaneseq
  %v171 = vshrl.u32 %v170, 7
  %v172 = vadd.s32 %v171, 8
  %v173 = vadd.s32 %v171, 16
  %v174 = vadd.s32 %v171, 24
  %vm175 = vcmp.lt.s32.totalorder %v171, 16
  %vm176 = vcmp.lt.s32.totalorder %v172, 16
  %vm177 = vcmp.lt.s32.totalorder %v173, 16
  %vm178 = vcmp.lt.s32.totalorder %v174, 16
  %v179 = vsel %vm175, 1, 0
  %v180 = vsel %vm176, 1, 0
  %v181 = vsel %vm177, 1, 0
  %v182 = vsel %vm178, 1, 0
  %vm183 = vcmp.eq.s32.totalorder %v179, 1
  %vm184 = vcmp.eq.s32.totalorder %v180, 1
  %vm185 = vcmp.eq.s32.totalorder %v181, 1
  %vm186 = vcmp.eq.s32.totalorder %v182, 1
  %v187 = vlaneseq
  %v188 = vshrl.u32 %v187, 7
  %v189 = vsub.s32 0, %v188
  %v190 = vrot.slane %v54, %v189
  %v191 = vlaneseq
  %v192 = vshrl.u32 %v191, 7
  %v193 = vsub.s32 1, %v192
  %v194 = vrot.slane %v54, %v193
  %v195 = vsel %vm183, %v190, %v194
  %v196 = vsel %vm184, %v190, %v194
  %v197 = vsel %vm185, %v190, %v194
  %v198 = vsel %vm186, %v190, %v194
  %v199 = vlaneseq
  %v200 = vshrl.u32 %v199, 7
  %v201 = vsub.s32 2, %v200
  %v202 = vrot.slane %v54, %v201
  %v203 = vlaneseq
  %v204 = vshrl.u32 %v203, 7
  %v205 = vsub.s32 3, %v204
  %v206 = vrot.slane %v54, %v205
  %v207 = vsel %vm183, %v202, %v206
  %v208 = vsel %vm184, %v202, %v206
  %v209 = vsel %vm185, %v202, %v206
  %v210 = vsel %vm186, %v202, %v206
  %v211 = vlaneseq
  %v212 = vshrl.u32 %v211, 7
  %v213 = vsub.s32 4, %v212
  %v214 = vrot.slane %v54, %v213
  %v215 = vlaneseq
  %v216 = vshrl.u32 %v215, 7
  %v217 = vsub.s32 5, %v216
  %v218 = vrot.slane %v54, %v217
  %v219 = vsel %vm183, %v214, %v218
  %v220 = vsel %vm184, %v214, %v218
  %v221 = vsel %vm185, %v214, %v218
  %v222 = vsel %vm186, %v214, %v218
  %v239 = vunpack.c.l.b16 %v38
  %v240 = vunpack.c.l.b16 %v39
  %v241 = vunpack.c.l.b16 %v40
  %v242 = vunpack.c.l.b16 %v41
  %v243 = vunpack.c.l.b16 %v42
  %v244 = vunpack.c.l.b16 %v43
  %v245 = vunpack.c.l.b16 %v44
  %v246 = vunpack.c.l.b16 %v45
  %v247 = vunpack.c.l.b16 %v46
  %v248 = vunpack.c.l.b16 %v47
  %v249 = vunpack.c.l.b16 %v48
  %v250 = vunpack.c.l.b16 %v49
  %v251 = vunpack.c.l.b16 %v50
  %v252 = vunpack.c.l.b16 %v51
  %v253 = vunpack.c.l.b16 %v52
  %v254 = vunpack.c.l.b16 %v53
  %v255 = vpack.c.b16 %v240, %v239
  %v256 = vpack.c.b16 %v242, %v241
  %v257 = vpack.c.b16 %v244, %v243
  %v258 = vpack.c.b16 %v246, %v245
  %v259 = vpack.c.b16 %v248, %v247
  %v260 = vpack.c.b16 %v250, %v249
  %v261 = vpack.c.b16 %v252, %v251
  %v262 = vpack.c.b16 %v254, %v253
  %271 = vmatprep.subr.bf16.mxu0 0
  %272 = vmatpush1.bf16.msra.mxu0 %v255
  %273 = vmatprep.subr.bf16.mxu0 0
  %274 = vmatpush1.bf16.msra.mxu0 %v256
  %275 = vmatprep.subr.bf16.mxu0 0
  %276 = vmatpush1.bf16.msra.mxu0 %v257
  %277 = vmatprep.subr.bf16.mxu0 0
  %278 = vmatpush1.bf16.msra.mxu0 %v258
  %279 = vmatprep.subr.bf16.mxu0 0
  %280 = vmatpush1.bf16.msra.mxu0 %v259
  %281 = vmatprep.subr.bf16.mxu0 0
  %282 = vmatpush1.bf16.msra.mxu0 %v260
  %283 = vmatprep.subr.bf16.mxu0 0
  %284 = vmatpush1.bf16.msra.mxu0 %v261
  %285 = vmatprep.subr.bf16.mxu0 0
  %286 = vmatpush1.bf16.msra.mxu0 %v262
  %287 = vmatprep.subr.bf16.mxu0 0
  %288 = vmatpush1.bf16.msra.mxu0 0
  %289 = vmatprep.subr.bf16.mxu0 0
  %290 = vmatpush1.bf16.msra.mxu0 0
  %291 = vmatprep.subr.bf16.mxu0 0
  %292 = vmatpush1.bf16.msra.mxu0 0
  %293 = vmatprep.subr.bf16.mxu0 0
  %294 = vmatpush1.bf16.msra.mxu0 0
  %295 = vmatprep.subr.bf16.mxu0 0
  %296 = vmatpush1.bf16.msra.mxu0 0
  %297 = vmatprep.subr.bf16.mxu0 0
  %298 = vmatpush1.bf16.msra.mxu0 0
  %299 = vmatprep.subr.bf16.mxu0 0
  %300 = vmatpush1.bf16.msra.mxu0 0
  %301 = vmatprep.subr.bf16.mxu0 0
  %302 = vmatpush1.bf16.msra.mxu0 0
  %303 = vmatprep.mubr.bf16.mxu0 0
  %304 = vmatmul.mubr.bf16.gmra.mrb[0].mxu0 %v168
  %v305 = vpop.f32.mrb[0].mxu0
  %v306 = vadd.f32 %v195, %v305
  %v307 = vpop.f32.mrb[0].mxu0
  %v308 = vpop.f32.mrb[0].mxu0
  %v309 = vadd.f32 %v196, %v308
  %v310 = vpop.f32.mrb[0].mxu0
  %311 = vmatprep.mubr.bf16.mxu0 0
  %312 = vmatmul.mubr.bf16.gmra.mrb[0].mxu0 %v169
  %v313 = vpop.f32.mrb[0].mxu0
  %v314 = vadd.f32 %v197, %v313
  %v315 = vpop.f32.mrb[0].mxu0
  %v316 = vpop.f32.mrb[0].mxu0
  %v317 = vadd.f32 %v198, %v316
  %v318 = vpop.f32.mrb[0].mxu0
  %319 = vdwg.mxu0
  %v320 = vmax.f32 %v306, 0.0
  %v321 = vmax.f32 %v309, 0.0
  %v322 = vmax.f32 %v314, 0.0
  %v323 = vmax.f32 %v317, 0.0
  %vm324 = vcmask 261120
  %v325 = vsel %vm324, %v320, 0.0
  %326 = vadd.xlane.f32.xlu0 %v325
  %v327 = vpop.xlane.xlu0 %326
  %v328 = vsel %vm324, %v321, 0.0
  %329 = vadd.xlane.f32.xlu0 %v328
  %v330 = vpop.xlane.xlu0 %329
  %v331 = vsel %vm324, %v322, 0.0
  %332 = vadd.xlane.f32.xlu0 %v331
  %v333 = vpop.xlane.xlu0 %332
  %v334 = vsel %vm324, %v323, 0.0
  %335 = vadd.xlane.f32.xlu0 %v334
  %v336 = vpop.xlane.xlu0 %335
  %v337 = vrcp.pop 32.0
  %v338 = vmul.f32 %v327, %v337
  %v339 = vmul.f32 %v330, %v337
  %v340 = vmul.f32 %v333, %v337
  %v341 = vmul.f32 %v336, %v337
  %v342 = vsub.f32 %v320, %v338
  %v343 = vsub.f32 %v321, %v339
  %v344 = vsub.f32 %v322, %v340
  %v345 = vsub.f32 %v323, %v341
  %v346 = vmul.f32 %v342, %v342
  %v347 = vmul.f32 %v343, %v343
  %v348 = vmul.f32 %v344, %v344
  %v349 = vmul.f32 %v345, %v345
  %v350 = vsel %vm324, %v346, 0.0
  %351 = vadd.xlane.f32.xlu0 %v350
  %v352 = vpop.xlane.xlu0 %351
  %v353 = vsel %vm324, %v347, 0.0
  %354 = vadd.xlane.f32.xlu0 %v353
  %v355 = vpop.xlane.xlu0 %354
  %v356 = vsel %vm324, %v348, 0.0
  %357 = vadd.xlane.f32.xlu0 %v356
  %v358 = vpop.xlane.xlu0 %357
  %v359 = vsel %vm324, %v349, 0.0
  %360 = vadd.xlane.f32.xlu0 %v359
  %v361 = vpop.xlane.xlu0 %360
  %v362 = vmul.f32 %v352, %v337
  %v363 = vmul.f32 %v355, %v337
  %v364 = vmul.f32 %v358, %v337
  %v365 = vmul.f32 %v361, %v337
  %v366 = vadd.f32 %v362, 1e-05
  %v367 = vadd.f32 %v363, 1e-05
  %v368 = vadd.f32 %v364, 1e-05
  %v369 = vadd.f32 %v365, 1e-05
  %v370 = vrsqrt.pop %v366
  %v371 = vrsqrt.pop %v367
  %v372 = vrsqrt.pop %v368
  %v373 = vrsqrt.pop %v369
  %v374 = vmul.f32 %v342, %v370
  %v375 = vmul.f32 %v343, %v371
  %v376 = vmul.f32 %v344, %v372
  %v377 = vmul.f32 %v345, %v373
  %v378 = vmul.f32 %v374, %v207
  %v379 = vmul.f32 %v375, %v208
  %v380 = vmul.f32 %v376, %v209
  %v381 = vmul.f32 %v377, %v210
  %v382 = vadd.f32 %v378, %v219
  %v383 = vadd.f32 %v379, %v220
  %v384 = vadd.f32 %v380, %v221
  %v385 = vadd.f32 %v381, %v222
  %v386 = vsub.f32 %v382, %v384
  %v387 = vsub.f32 %v383, %v385
  %s388 = smul.u32 0, 16
  %v389 = vstv %s388
  %v390 = vadd.s32 %v389, %v171
  %v391 = vadd.s32 %v389, %v172
  %vm392 = vcmp.lt.s32.totalorder %v390, 8
  %vm393 = vcmp.lt.s32.totalorder %v391, 8
  %v394 = vmul.f32 %v386, %v386
  %v395 = vmul.f32 %v387, %v387
  %v396 = vsel %vm392, 1, 0
  %v397 = vsel %vm393, 1, 0
  %vm398 = vcmp.eq.s32.totalorder %v396, 1
  %vm399 = vcmp.eq.s32.totalorder %v397, 1
  %v400 = vsel %vm398, %v394, 0.0
  %v401 = vsel %vm399, %v395, 0.0
  %v402 = vsel %vm324, %v400, 0.0
  %v403 = vsel %vm324, %v401, 0.0
  %v404 = vadd.f32 %v402, %v403
  %405 = vadd.xlane.f32.xlu0 %v404
  %v406 = vpop.xlane.xlu0 %405
  %v407 = vrot.slane %v406, 4
  %v408 = vadd.f32 %v406, %v407
  %v409 = vrot.slane %v408, 2
  %v410 = vadd.f32 %v408, %v409
  %v411 = vrot.slane %v410, 1
  %v412 = vadd.f32 %v410, %v411
  %s413 = vtos %v412
  %v414 = vstv %s413
  %415 = vst [vmem:[%s4] sm:$0xff] %v414
  // Predicated region
  $region18: #{align_forward.1} parent=0 // pred_check
    _
  $region19: #{align_forward.1} parent=0 // pred_check_branch
    %417 = sbr.rel (0) target = $region21
  $region20: #{align_forward.1} parent=0 // pred_region
    _
  $region21: #{align_forward.1} parent=0 // pred_fallthru
    _
  // Predicated region
  $region22: #{align_forward.1} parent=0 // pred_check
    _
  $region23: #{align_forward.1} parent=0 // pred_check_branch
    %419 = sbr.rel (0) target = $region25
  $region24: #{align_forward.1} parent=0 // pred_region
    _
  $region25: #{align_forward.1} parent=0 // pred_fallthru
    _

</llo_original>
